<compile_context>
chip_gen: v6e
topology: v6e:2x2x1
jax: 0.10.0
libtpu: 0.0.40
codegen_flags: <defaults>
</compile_context>

<pallas_src>
import functools

import jax
import jax.numpy as jnp
from jax.experimental import pallas as pl
from jax.experimental.pallas import tpu as pltpu

FEAT_DIM = 50  # feat_dim in the reference module


# ----------------------------------------------------------------------------- kernel
def _fused_conv_tanh_max_kernel(x_ref, w_ref, b_ref, pen_ref, o_ref):
    """Fused: k_max shifted dots (all branches) -> bias -> tanh -> penalty -> max-over-time.

    x_ref:   (bt, Lp, C_in)              bf16  masked embedding, time pre-padded to Lp
    w_ref:   (k_max*C_in, C_out_pad)     bf16  fused conv weights (prepared at init)
    b_ref:   (1, C_out_pad)              f32   fused conv bias
    pen_ref: (T, C_out_pad)              f32   0 where (t, channel) valid, -1e9 otherwise
    o_ref:   (bt, C_out_pad)             f32   max_t tanh(conv(x))
    """
    bt, Lp, cin = x_ref.shape
    kcin, cout = w_ref.shape
    k_max = kcin // cin
    T = pen_ref.shape[0]                       # == Lp - k_max + 1 (longest branch length)

    # Accumulated shifted dots: one MXU push per conv tap, f32 accumulation.
    # Avoids the lane-axis im2col concat / relayout of the previous version.
    acc = jnp.zeros((bt * T, cout), jnp.float32)
    for dk in range(k_max):                    # short static loop (k_max small)
        lhs = x_ref[:, dk:dk + T, :].reshape(bt * T, cin)          # bf16, contiguous slab
        acc = acc + jnp.dot(lhs, w_ref[dk * cin:(dk + 1) * cin, :],
                            preferred_element_type=jnp.float32)

    y = jnp.tanh(acc.reshape(bt, T, cout) + b_ref[...])            # f32 bias add + EUP tanh
    y = y + pen_ref[...]                       # grid-invariant validity penalty (precomputed)
    o_ref[...] = jnp.max(y, axis=1)            # (bt, C_out_pad), lane-dense store


def _pick_batch_tile(batch):
    # Multiple of 8 (output sublane constraint); capped at 256 so big batches give >=2 grid
    # steps (v7x megacore sharding) while f32 intermediates stay far inside scoped VMEM.
    return min(((batch + 7) // 8) * 8, 256)


def fused_conv_tanh_max(emb, w_fused, b_fused, penalty, *, k_max, min_k):
    """All Conv1d branches of ConvModule.forward, fused into one Pallas kernel.

    emb: (B, L, C_in) bf16, already masked (mask folded into the gather in the wrapper).
    Returns (B, C_out_pad) f32; caller slices off the padded output channels.
    """
    B, L, cin = emb.shape
    kcin, cout_pad = w_fused.shape
    T = penalty.shape[0]
    assert T == L - min_k + 1, (T, L, min_k)

    bt = _pick_batch_tile(B)
    b_pad = pl.cdiv(B, bt) * bt
    lp = L + (k_max - min_k)
    # Pad batch (grid multiple) and time (so every shifted window slice has static length T).
    # Pad rows are zero; batch pad rows are sliced off below, time pad rows are penalized.
    emb = jnp.pad(emb, ((0, b_pad - B), (0, lp - L), (0, 0)))

    out = pl.pallas_call(
        _fused_conv_tanh_max_kernel,
        out_shape=jax.ShapeDtypeStruct((b_pad, cout_pad), jnp.float32),
        grid=(b_pad // bt,),
        in_specs=[
            pl.BlockSpec((bt, lp, cin), lambda i: (i, 0, 0)),
            pl.BlockSpec((kcin, cout_pad), lambda i: (0, 0)),
            pl.BlockSpec((1, cout_pad), lambda i: (0, 0)),
            pl.BlockSpec((T, cout_pad), lambda i: (0, 0)),
        ],
        out_specs=pl.BlockSpec((bt, cout_pad), lambda i: (i, 0)),
        compiler_params=pltpu.CompilerParams(
            dimension_semantics=("parallel",),
            vmem_limit_bytes=32 * 1024 * 1024,
        ),
    )(emb, w_fused, b_fused, penalty)
    return out[:B]


# ----------------------------------------------------------------------------- params
def init_conv_module_params(key, comp_cnt, input_size, kernel_sizes):
    """Parameters in the PyTorch layout.

    comp_weight: (comp_cnt, FEAT_DIM)
    conv_w[i]:   (25*k, input_size, k)   (PyTorch Conv1d weight layout)
    conv_b[i]:   (25*k,)
    """
    keys = jax.random.split(key, 1 + 2 * len(kernel_sizes))
    params = {
        "comp_weight": jax.random.normal(keys[0], (comp_cnt, FEAT_DIM), jnp.float32),
        "conv_w": [],
        "conv_b": [],
    }
    for i, k in enumerate(kernel_sizes):
        cout = 25 * k
        wkey, bkey = keys[1 + 2 * i], keys[2 + 2 * i]
        params["conv_w"].append(
            0.1 * jax.random.normal(wkey, (cout, input_size, k), jnp.float32))
        params["conv_b"].append(
            0.1 * jax.random.normal(bkey, (cout,), jnp.float32))
    return params


def prepare_fused_params(params, kernel_sizes, max_len, *, matmul_dtype=jnp.bfloat16):
    """One-time weight layout work (hoisted out of the forward pass).

    Builds the fused (k_max*C_in, C_out_pad) RHS (C_out padded to a multiple of 128 for
    lane-dense stores / full MXU tiles), the fused bias, the per-(t, channel) additive
    validity penalty, and the bf16 embedding table.
    """
    cin = params["conv_w"][0].shape[1]
    k_max, min_k = max(kernel_sizes), min(kernel_sizes)
    T = max_len - min_k + 1
    cout_total = sum(w.shape[0] for w in params["conv_w"])
    cout_pad = pl.cdiv(cout_total, 128) * 128          # 150 -> 256

    w_blocks, b_parts, pen_cols = [], [], []
    t_idx = jnp.arange(T, dtype=jnp.float32)[:, None]
    for k, w, b in zip(kernel_sizes, params["conv_w"], params["conv_b"]):
        cout_i = w.shape[0]
        w_kco = jnp.transpose(w, (2, 1, 0))            # (k, C_in, C_out_i)
        if k_max > k:
            w_kco = jnp.concatenate(
                [w_kco, jnp.zeros((k_max - k, cin, cout_i), w_kco.dtype)], axis=0)
        w_blocks.append(w_kco.reshape(k_max * cin, cout_i))
        b_parts.append(b)
        # Branch with kernel k only has outputs t < max_len - k + 1; -1e9 elsewhere
        # (large-negative additive penalty: safe regardless of activation range).
        valid = (t_idx < float(max_len - k + 1)).astype(jnp.float32)
        pen_cols.append(jnp.broadcast_to((valid - 1.0) * 1e9, (T, cout_i)))

    pad_c = cout_pad - cout_total
    w_fused = jnp.pad(jnp.concatenate(w_blocks, axis=1), ((0, 0), (0, pad_c)))
    b_fused = jnp.pad(jnp.concatenate(b_parts).reshape(1, -1), ((0, 0), (0, pad_c)))
    penalty = jnp.pad(jnp.concatenate(pen_cols, axis=1), ((0, 0), (0, pad_c)))
    return {
        # bf16 table: the matmul LHS was cast to bf16 anyway and the mask is exactly {0,1},
        # so the bf16 gather+mask is numerically identical to cast-after-mask.
        "comp_weight": params["comp_weight"].astype(matmul_dtype),
        "w_fused": w_fused.astype(matmul_dtype),
        "b_fused": b_fused.astype(jnp.float32),
        "penalty": penalty.astype(jnp.float32),
    }


# ----------------------------------------------------------------------------- forward
@functools.partial(jax.jit, static_argnames=("kernel_sizes",))
def conv_module_forward(fused, composer, emb_mask, kernel_sizes):
    """Mirror of ConvModule.forward (all Conv1d branches in one Pallas kernel).

    composer: (B, L) int32 indices (must be in-vocab; jnp.take clamps instead of raising)
    emb_mask: (B, L, 1) float32 in {0, 1}
    returns:  (B, sum(25*k)) float32
    """
    k_max, min_k = max(kernel_sizes), min(kernel_sizes)
    cout = sum(25 * k for k in kernel_sizes)
    # Gather + mask folded together in bf16 (one fused XLA op; mask is exactly {0,1}).
    emb = jnp.take(fused["comp_weight"], composer, axis=0)          # (B, L, 50) bf16
    emb = emb * emb_mask.astype(jnp.bfloat16)
    out = fused_conv_tanh_max(
        emb, fused["w_fused"], fused["b_fused"], fused["penalty"],
        k_max=k_max, min_k=min_k)
    return out[:, :cout]                                            # drop padded channels


def reference_forward(params, composer, emb_mask, kernel_sizes):
    """Pure-JAX f32 reference of the PyTorch module (for correctness checking)."""
    emb = jnp.take(params["comp_weight"], composer, axis=0) * emb_mask
    B, L, _ = emb.shape
    outs = []
    for k, w, b in zip(kernel_sizes, params["conv_w"], params["conv_b"]):
        lout = L - k + 1
        w_kco = jnp.transpose(w, (2, 1, 0))                         # (k, C_in, C_out)
        acc = jnp.zeros((B, lout, w.shape[0]), jnp.float32)
        for dk in range(k):
            acc = acc + jnp.einsum("blc,co->blo", emb[:, dk:dk + lout, :], w_kco[dk])
        y = jnp.tanh(acc + b.reshape(1, 1, -1))
        outs.append(jnp.max(y, axis=1))
    return jnp.concatenate(outs, axis=1)


# ----------------------------------------------------------------------------- main
if __name__ == "__main__":
    key = jax.random.PRNGKey(0)

    # Small shapes consistent with the module's forward.
    B, L = 2, 8                  # batch, composer sequence length (max_comp_cnt)
    comp_cnt = 20                # embedding vocabulary size
    kernel_sizes = (1, 2, 3)     # -> out_channels [25, 50, 75]
    input_size = FEAT_DIM        # Conv1d in_channels == feat_dim (after permute)

    pkey, ckey, mkey = jax.random.split(key, 3)
    params = init_conv_module_params(pkey, comp_cnt, input_size, kernel_sizes)
    fused = prepare_fused_params(params, kernel_sizes, max_len=L,
                                 matmul_dtype=jnp.bfloat16)

    composer = jax.random.randint(ckey, (B, L), 0, comp_cnt, dtype=jnp.int32)
    emb_mask = (jax.random.uniform(mkey, (B, L, 1)) > 0.2).astype(jnp.float32)

    out = conv_module_forward(fused, composer, emb_mask, kernel_sizes)
    out = jax.block_until_ready(out)

    expected_cols = sum(25 * k for k in kernel_sizes)  # 150
    assert out.shape == (B, expected_cols), out.shape
    assert bool(jnp.all(jnp.isfinite(out)))

    # Compare against the pure-JAX f32 reference (bf16-MXU tolerance; K<=150).
    ref = reference_forward(params, composer, emb_mask, kernel_sizes)
    assert float(jnp.max(jnp.abs(out - ref))) < 0.1

    # Larger batch: exercises batch padding (300 -> 512) and a >1-step parallel grid.
    ckey2, mkey2 = jax.random.split(jax.random.PRNGKey(1))
    B2 = 300
    composer2 = jax.random.randint(ckey2, (B2, L), 0, comp_cnt, dtype=jnp.int32)
    emb_mask2 = (jax.random.uniform(mkey2, (B2, L, 1)) > 0.2).astype(jnp.float32)
    out2 = jax.block_until_ready(
        conv_module_forward(fused, composer2, emb_mask2, kernel_sizes))
    ref2 = reference_forward(params, composer2, emb_mask2, kernel_sizes)
    assert out2.shape == (B2, expected_cols), out2.shape
    assert float(jnp.max(jnp.abs(out2 - ref2))) < 0.1

    print("KERNEL_OK")
</pallas_src>

<mosaic_0001>
module attributes {stable_mosaic.version = 11 : i64} {
  func.func @_fused_conv_tanh_max_kernel(%arg0: i32, %arg1: memref<8x10x50xbf16, #tpu.memory_space<vmem>>, %arg2: memref<150x256xbf16, #tpu.memory_space<vmem>>, %arg3: memref<1x256xf32, #tpu.memory_space<vmem>>, %arg4: memref<8x256xf32, #tpu.memory_space<vmem>>, %arg5: memref<8x256xf32, #tpu.memory_space<vmem>>) attributes {dimension_semantics = [#tpu.dimension_semantics<parallel>], iteration_bounds = array<i64: 1>, scalar_prefetch = 0 : i64, scratch_operands = 0 : i64, tpu.core_type = #tpu.core_type<tc>, window_params = [{transform_indices = @transform_0, window_bounds = array<i64: 8, 10, 50>}, {pipeline_mode = #tpu.pipeline_mode<synchronous>, transform_indices = @transform_1, window_bounds = array<i64: 150, 256>}, {pipeline_mode = #tpu.pipeline_mode<synchronous>, transform_indices = @transform_2, window_bounds = array<i64: 1, 256>}, {pipeline_mode = #tpu.pipeline_mode<synchronous>, transform_indices = @transform_3, window_bounds = array<i64: 8, 256>}, {transform_indices = @transform_4, window_bounds = array<i64: 8, 256>}]} {
    %cst = arith.constant 0.000000e+00 : f32
    %0 = vector.broadcast %cst : f32 to vector<64x256xf32>
    %c0 = arith.constant 0 : index
    %c0_0 = arith.constant 0 : index
    %c0_1 = arith.constant 0 : index
    %1 = vector.load %arg1[%c0, %c0_0, %c0_1] : memref<8x10x50xbf16, #tpu.memory_space<vmem>>, vector<8x8x50xbf16>
    %2 = vector.shape_cast %1 : vector<8x8x50xbf16> to vector<64x50xbf16>
    %c0_2 = arith.constant 0 : index
    %c0_3 = arith.constant 0 : index
    %3 = vector.load %arg2[%c0_2, %c0_3] : memref<150x256xbf16, #tpu.memory_space<vmem>>, vector<50x256xbf16>
    %cst_4 = arith.constant dense<0.000000e+00> : vector<64x256xf32>
    %4 = tpu.matmul %2, %3, %cst_4 {dimension_numbers = #tpu.dot_dimension_numbers<[1], [0], [0], [1], [0, 0, 1, 1], [], []>} : vector<64x50xbf16>, vector<50x256xbf16>, vector<64x256xf32> -> vector<64x256xf32>
    %5 = arith.addf %0, %4 : vector<64x256xf32>
    %c0_5 = arith.constant 0 : index
    %c1 = arith.constant 1 : index
    %c0_6 = arith.constant 0 : index
    %6 = vector.load %arg1[%c0_5, %c1, %c0_6] : memref<8x10x50xbf16, #tpu.memory_space<vmem>>, vector<8x8x50xbf16>
    %7 = vector.shape_cast %6 : vector<8x8x50xbf16> to vector<64x50xbf16>
    %c50 = arith.constant 50 : index
    %c0_7 = arith.constant 0 : index
    %8 = vector.load %arg2[%c50, %c0_7] : memref<150x256xbf16, #tpu.memory_space<vmem>>, vector<50x256xbf16>
    %cst_8 = arith.constant dense<0.000000e+00> : vector<64x256xf32>
    %9 = tpu.matmul %7, %8, %cst_8 {dimension_numbers = #tpu.dot_dimension_numbers<[1], [0], [0], [1], [0, 0, 1, 1], [], []>} : vector<64x50xbf16>, vector<50x256xbf16>, vector<64x256xf32> -> vector<64x256xf32>
    %10 = arith.addf %5, %9 : vector<64x256xf32>
    %c0_9 = arith.constant 0 : index
    %c2 = arith.constant 2 : index
    %c0_10 = arith.constant 0 : index
    %11 = vector.load %arg1[%c0_9, %c2, %c0_10] : memref<8x10x50xbf16, #tpu.memory_space<vmem>>, vector<8x8x50xbf16>
    %12 = vector.shape_cast %11 : vector<8x8x50xbf16> to vector<64x50xbf16>
    %c100 = arith.constant 100 : index
    %c0_11 = arith.constant 0 : index
    %13 = vector.load %arg2[%c100, %c0_11] : memref<150x256xbf16, #tpu.memory_space<vmem>>, vector<50x256xbf16>
    %cst_12 = arith.constant dense<0.000000e+00> : vector<64x256xf32>
    %14 = tpu.matmul %12, %13, %cst_12 {dimension_numbers = #tpu.dot_dimension_numbers<[1], [0], [0], [1], [0, 0, 1, 1], [], []>} : vector<64x50xbf16>, vector<50x256xbf16>, vector<64x256xf32> -> vector<64x256xf32>
    %15 = arith.addf %10, %14 : vector<64x256xf32>
    %16 = vector.shape_cast %15 : vector<64x256xf32> to vector<8x8x256xf32>
    %c0_13 = arith.constant 0 : index
    %c0_14 = arith.constant 0 : index
    %17 = vector.load %arg3[%c0_13, %c0_14] : memref<1x256xf32, #tpu.memory_space<vmem>>, vector<1x256xf32>
    %18 = vector.shape_cast %17 : vector<1x256xf32> to vector<1x1x256xf32>
    %19 = vector.broadcast %18 : vector<1x1x256xf32> to vector<8x8x256xf32>
    %20 = arith.addf %16, %19 : vector<8x8x256xf32>
    %21 = math.tanh %20 : vector<8x8x256xf32>
    %c0_15 = arith.constant 0 : index
    %c0_16 = arith.constant 0 : index
    %22 = vector.load %arg4[%c0_15, %c0_16] : memref<8x256xf32, #tpu.memory_space<vmem>>, vector<8x256xf32>
    %23 = vector.shape_cast %22 : vector<8x256xf32> to vector<1x8x256xf32>
    %24 = vector.broadcast %23 : vector<1x8x256xf32> to vector<8x8x256xf32>
    %25 = arith.addf %21, %24 : vector<8x8x256xf32>
    %cst_17 = arith.constant dense<0xFF800000> : vector<8x256xf32>
    %26 = vector.multi_reduction <maximumf>, %25, %cst_17 [1] : vector<8x8x256xf32> to vector<8x256xf32>
    %c0_18 = arith.constant 0 : index
    %c0_19 = arith.constant 0 : index
    %27 = vector.load %arg5[%c0_18, %c0_19] : memref<8x256xf32, #tpu.memory_space<vmem>>, vector<8x256xf32>
    tpu.vector_store %arg5[%c0_18, %c0_19], %26 {strides = array<i32>} : memref<8x256xf32, #tpu.memory_space<vmem>>, vector<8x256xf32>,
    return
  }
  func.func @transform_0(%arg0: i32) -> (i32, i32, i32) {
    %c0_i32 = arith.constant 0 : i32
    %c0_i32_0 = arith.constant 0 : i32
    %c0_i32_1 = arith.constant 0 : i32
    return %arg0, %c0_i32, %c0_i32_0 : i32, i32, i32
  }
  func.func @transform_1(%arg0: i32) -> (i32, i32) {
    %c0_i32 = arith.constant 0 : i32
    %c0_i32_0 = arith.constant 0 : i32
    %c0_i32_1 = arith.constant 0 : i32
    return %c0_i32, %c0_i32_0 : i32, i32
  }
  func.func @transform_2(%arg0: i32) -> (i32, i32) {
    %c0_i32 = arith.constant 0 : i32
    %c0_i32_0 = arith.constant 0 : i32
    %c0_i32_1 = arith.constant 0 : i32
    return %c0_i32, %c0_i32_0 : i32, i32
  }
  func.func @transform_3(%arg0: i32) -> (i32, i32) {
    %c0_i32 = arith.constant 0 : i32
    %c0_i32_0 = arith.constant 0 : i32
    %c0_i32_1 = arith.constant 0 : i32
    return %c0_i32, %c0_i32_0 : i32, i32
  }
  func.func @transform_4(%arg0: i32) -> (i32, i32) {
    %c0_i32 = arith.constant 0 : i32
    %c0_i32_0 = arith.constant 0 : i32
    return %arg0, %c0_i32 : i32, i32
  }
}

</mosaic_0001>

<llo_original>
// kernel: conv_module_forward.1
$region0: #{conv_module_forward.1}
  #allocation0 [shape = 'u32[]', space=smem, size = 0x4, offset = 0x4, fixed_abs, tag = 'smem constant byte address 0x4 - core index']
  #allocation1 [shape = 'u32[144,128]{1,0:T(1,128)}', space=vmem, size = 0x12000, scoped, tag = 'internal scratch']
  %s0 = inlined_call_operand.vmem [shape: bf16[8,10,50], index: 0, kind: input, shape index: {}]
  %s1 = inlined_call_operand.vmem [shape: bf16[150,256], index: 1, kind: input, shape index: {}]
  %s2 = inlined_call_operand.vmem [shape: f32[1,256], index: 2, kind: input, shape index: {}]
  %s3 = inlined_call_operand.vmem [shape: f32[8,256], index: 3, kind: input, shape index: {}]
  %s4 = inlined_call_operand.vmem [shape: f32[8,256], index: 4, kind: output, shape index: {}]
  %s5 = sld [smem:[#allocation0]]
  $region26: #{conv_module_forward.1} parent=0
    _
  %s7 = ssub.s32 1, %s5
  %s8 = scalar_select 0, %s7, %s5
  // Predicated region
  $region2: #{conv_module_forward.1} parent=0 // pred_check
    _
  $region3: #{conv_module_forward.1} parent=0 // pred_check_branch
    %10 = sbr.rel (0) target = $region5
  $region4: #{conv_module_forward.1} parent=0 // pred_region
    _
  $region5: #{conv_module_forward.1} parent=0 // pred_fallthru
    _
  // Predicated region
  $region6: #{conv_module_forward.1} parent=0 // pred_check
    _
  $region7: #{conv_module_forward.1} parent=0 // pred_check_branch
    %12 = sbr.rel (0) target = $region9
  $region8: #{conv_module_forward.1} parent=0 // pred_region
    _
  $region9: #{conv_module_forward.1} parent=0 // pred_fallthru
    _
  // Predicated region
  $region10: #{conv_module_forward.1} parent=0 // pred_check
    _
  $region11: #{conv_module_forward.1} parent=0 // pred_check_branch
    %14 = sbr.rel (0) target = $region13
  $region12: #{conv_module_forward.1} parent=0 // pred_region
    _
  $region13: #{conv_module_forward.1} parent=0 // pred_fallthru
    _
  // Predicated region
  $region14: #{conv_module_forward.1} parent=0 // pred_check
    _
  $region15: #{conv_module_forward.1} parent=0 // pred_check_branch
    %16 = sbr.rel (0) target = $region17
  $region16: #{conv_module_forward.1} parent=0 // pred_region
    _
  $region17: #{conv_module_forward.1} parent=0 // pred_fallthru
    _
  %v18 = vld [vmem:[%s0] sm:$0xf]
  %v19 = vld [vmem:[%s0 + $0x8] sm:$0xf]
  %v20 = vld [vmem:[%s0 + $0x10] sm:$0xf]
  %v21 = vld [vmem:[%s0 + $0x18] sm:$0xf]
  %v22 = vld [vmem:[%s0 + $0x20] sm:$0xf]
  %v23 = vld [vmem:[%s0 + $0x28] sm:$0xf]
  %v24 = vld [vmem:[%s0 + $0x30] sm:$0xf]
  %v25 = vld [vmem:[%s0 + $0x38] sm:$0xf]
  %v26 = vld [vmem:[%s1] sm:$0xff]
  %v27 = vld [vmem:[%s1 + $0x8] sm:$0xff]
  %v28 = vld [vmem:[%s1 + $0x10] sm:$0xff]
  %v29 = vld [vmem:[%s1 + $0x18] sm:$0xff]
  %v30 = vld [vmem:[%s1 + $0x20] sm:$0xff]
  %v31 = vld [vmem:[%s1 + $0x28] sm:$0xff]
  %v32 = vld [vmem:[%s1 + $0x30] sm:$0x11]
  %v33 = vld [vmem:[%s0 + $0x4] sm:$0x1]
  %v34 = vld [vmem:[%s0 + $0xc] sm:$0x1]
  %v35 = vld [vmem:[%s0 + $0x14] sm:$0x1]
  %v36 = vld [vmem:[%s0 + $0x1c] sm:$0x1]
  %v37 = vld [vmem:[%s0 + $0x24] sm:$0x1]
  %v38 = vld [vmem:[%s0 + $0x2c] sm:$0x1]
  %v39 = vld [vmem:[%s0 + $0x34] sm:$0x1]
  %v40 = vld [vmem:[%s0 + $0x3c] sm:$0x1]
  %vm41 = vsmask.f32 3328
  %vm42 = vsmask.f32 7440
  %vm43 = vmor %vm41, %vm42
  %v45 = vshrl.u32 %v18, 16
  %v47 = vrot.slane %v45, 4
  %v48 = vshll.u32 %v18, 16
  %v50 = vrot.slane %v48, 5
  %v51 = vor.u32 %v47, %v50
  %v52 = vrot.slane %v51, 4
  %v54 = vshll.u32 %v33, 16
  %v56 = vrot.slane %v54, 5
  %v57 = vsel %vm43, %v52, %v56
  %v59 = vshrl.u32 %v19, 16
  %v61 = vrot.slane %v59, 4
  %v62 = vshll.u32 %v19, 16
  %v64 = vrot.slane %v62, 5
  %v65 = vor.u32 %v61, %v64
  %v66 = vrot.slane %v65, 4
  %v68 = vshll.u32 %v34, 16
  %v70 = vrot.slane %v68, 5
  %v71 = vsel %vm43, %v66, %v70
  %v73 = vshrl.u32 %v20, 16
  %v75 = vrot.slane %v73, 4
  %v76 = vshll.u32 %v20, 16
  %v78 = vrot.slane %v76, 5
  %v79 = vor.u32 %v75, %v78
  %v80 = vrot.slane %v79, 4
  %v82 = vshll.u32 %v35, 16
  %v84 = vrot.slane %v82, 5
  %v85 = vsel %vm43, %v80, %v84
  %v87 = vshrl.u32 %v21, 16
  %v89 = vrot.slane %v87, 4
  %v90 = vshll.u32 %v21, 16
  %v92 = vrot.slane %v90, 5
  %v93 = vor.u32 %v89, %v92
  %v94 = vrot.slane %v93, 4
  %v96 = vshll.u32 %v36, 16
  %v98 = vrot.slane %v96, 5
  %v99 = vsel %vm43, %v94, %v98
  %v101 = vshrl.u32 %v22, 16
  %v103 = vrot.slane %v101, 4
  %v104 = vshll.u32 %v22, 16
  %v106 = vrot.slane %v104, 5
  %v107 = vor.u32 %v103, %v106
  %v108 = vrot.slane %v107, 4
  %v110 = vshll.u32 %v37, 16
  %v112 = vrot.slane %v110, 5
  %v113 = vsel %vm43, %v108, %v112
  %v115 = vshrl.u32 %v23, 16
  %v117 = vrot.slane %v115, 4
  %v118 = vshll.u32 %v23, 16
  %v120 = vrot.slane %v118, 5
  %v121 = vor.u32 %v117, %v120
  %v122 = vrot.slane %v121, 4
  %v124 = vshll.u32 %v38, 16
  %v126 = vrot.slane %v124, 5
  %v127 = vsel %vm43, %v122, %v126
  %v129 = vshrl.u32 %v24, 16
  %v131 = vrot.slane %v129, 4
  %v132 = vshll.u32 %v24, 16
  %v134 = vrot.slane %v132, 5
  %v135 = vor.u32 %v131, %v134
  %v136 = vrot.slane %v135, 4
  %v138 = vshll.u32 %v39, 16
  %v140 = vrot.slane %v138, 5
  %v141 = vsel %vm43, %v136, %v140
  %v143 = vshrl.u32 %v25, 16
  %v145 = vrot.slane %v143, 4
  %v146 = vshll.u32 %v25, 16
  %v148 = vrot.slane %v146, 5
  %v149 = vor.u32 %v145, %v148
  %v150 = vrot.slane %v149, 4
  %v152 = vshll.u32 %v40, 16
  %v154 = vrot.slane %v152, 5
  %v155 = vsel %vm43, %v150, %v154
  %v156 = vld [vmem:[%s1 + $0x30] sm:$0xee]
  %v157 = vld [vmem:[%s1 + $0x38] sm:$0xff]
  %v158 = vld [vmem:[%s1 + $0x40] sm:$0xff]
  %v159 = vld [vmem:[%s1 + $0x48] sm:$0xff]
  %v160 = vld [vmem:[%s1 + $0x50] sm:$0xff]
  %v161 = vld [vmem:[%s1 + $0x58] sm:$0xff]
  %v162 = vld [vmem:[%s1 + $0x60] sm:$0x33]
  %v163 = vunpack.c.l.b16 %v57
  %v164 = vunpack.c.l.b16 %v71
  %v165 = vunpack.c.l.b16 %v85
  %v166 = vunpack.c.l.b16 %v99
  %v167 = vunpack.c.l.b16 %v113
  %v168 = vunpack.c.l.b16 %v127
  %v169 = vunpack.c.l.b16 %v141
  %v170 = vunpack.c.l.b16 %v155
  %v171 = vpack.c.b16 %v164, %v163
  %v172 = vpack.c.b16 %v166, %v165
  %v173 = vpack.c.b16 %v168, %v167
  %v174 = vpack.c.b16 %v170, %v169
  %v182 = vunpack.c.l.b16 %v156
  %v183 = vunpack.c.h.b16 %v156
  %v184 = vunpack.c.l.b16 %v157
  %v185 = vunpack.c.h.b16 %v157
  %v186 = vunpack.c.l.b16 %v158
  %v187 = vunpack.c.h.b16 %v158
  %v188 = vunpack.c.l.b16 %v159
  %v189 = vunpack.c.h.b16 %v159
  %v190 = vunpack.c.l.b16 %v160
  %v191 = vunpack.c.h.b16 %v160
  %v192 = vunpack.c.l.b16 %v161
  %v193 = vunpack.c.h.b16 %v161
  %v194 = vunpack.c.l.b16 %v162
  %v195 = vunpack.c.h.b16 %v162
  %v196 = vpack.c.b16 %v184, %v182
  %v197 = vpack.c.b16 %v185, %v183
  %v198 = vpack.c.b16 %v188, %v186
  %v199 = vpack.c.b16 %v189, %v187
  %v200 = vpack.c.b16 %v192, %v190
  %v201 = vpack.c.b16 %v193, %v191
  %v202 = vpack.c.b16 %v194, %v194
  %v203 = vpack.c.b16 %v195, %v195
  %vm204 = vcmask 1046528
  %v205 = vrot.slane %v196, 1
  %v206 = vrot.slane %v198, 1
  %v207 = vsel %vm204, %v205, %v206
  %v208 = vrot.slane %v197, 1
  %v209 = vrot.slane %v199, 1
  %v210 = vsel %vm204, %v208, %v209
  %v211 = vrot.slane %v200, 1
  %v212 = vsel %vm204, %v206, %v211
  %v213 = vrot.slane %v201, 1
  %v214 = vsel %vm204, %v209, %v213
  %v215 = vrot.slane %v202, 1
  %v216 = vsel %vm204, %v211, %v215
  %v217 = vrot.slane %v203, 1
  %v218 = vsel %vm204, %v213, %v217
  %vm225 = vcmask 408576
  %v227 = vsel %vm225, %v171, 0
  %v230 = vsel %vm225, %v172, 0
  %v233 = vsel %vm225, %v173, 0
  %v236 = vsel %vm225, %v174, 0
  %vm238 = vcmask 1040384
  %v240 = vsel %vm238, %v215, 0
  %v243 = vsel %vm238, %v217, 0
  %245 = vmatprep.subr.bf16.mxu0 0
  %246 = vmatpush1.bf16.msra.mxu0 0
  %247 = vmatprep.subr.bf16.mxu0 0
  %248 = vmatpush1.bf16.msra.mxu0 0
  %249 = vmatprep.subr.bf16.mxu0 0
  %250 = vmatpush1.bf16.msra.mxu0 0
  %251 = vmatprep.subr.bf16.mxu0 0
  %252 = vmatpush1.bf16.msra.mxu0 0
  %253 = vmatprep.subr.bf16.mxu0 %v243
  %254 = vmatpush1.bf16.msra.mxu0 %v240
  %255 = vmatprep.subr.bf16.mxu0 %v218
  %256 = vmatpush1.bf16.msra.mxu0 %v216
  %257 = vmatprep.subr.bf16.mxu0 %v214
  %258 = vmatpush1.bf16.msra.mxu0 %v212
  %259 = vmatprep.subr.bf16.mxu0 %v210
  %260 = vmatpush1.bf16.msra.mxu0 %v207
  %261 = vmatprep.subr.bf16.mxu0 0
  %262 = vmatpush2.bf16.msra.mxu0 0
  %263 = vmatprep.subr.bf16.mxu0 0
  %264 = vmatpush2.bf16.msra.mxu0 0
  %265 = vmatprep.subr.bf16.mxu0 0
  %266 = vmatpush2.bf16.msra.mxu0 0
  %267 = vmatprep.subr.bf16.mxu0 0
  %268 = vmatpush2.bf16.msra.mxu0 0
  %269 = vmatprep.subr.bf16.mxu0 0
  %270 = vmatpush2.bf16.msra.mxu0 0
  %271 = vmatprep.subr.bf16.mxu0 0
  %272 = vmatpush2.bf16.msra.mxu0 0
  %273 = vmatprep.subr.bf16.mxu0 0
  %274 = vmatpush2.bf16.msra.mxu0 0
  %275 = vmatprep.subr.bf16.mxu0 0
  %276 = vmatpush2.bf16.msra.mxu0 0
  %277 = vmatprep.mubr.bf16.mxu0 0
  %278 = vmatmul.mubr.bf16.gmra.mxu0 %v227
  %v279 = vpop.f32.mrf.mxu0
  %v280 = vadd.f32 0.0, %v279
  %v281 = vpop.f32.mrf.mxu0
  %v282 = vadd.f32 0.0, %v281
  %v283 = vpop.f32.mrf.mxu0
  %v284 = vadd.f32 0.0, %v283
  %v285 = vpop.f32.mrf.mxu0
  %v286 = vadd.f32 0.0, %v285
  %287 = vmatprep.mubr.bf16.mxu0 0
  %288 = vmatmul.mubr.bf16.gmra.mxu0 %v230
  %v289 = vpop.f32.mrf.mxu0
  %v290 = vadd.f32 0.0, %v289
  %v291 = vpop.f32.mrf.mxu0
  %v292 = vadd.f32 0.0, %v291
  %v293 = vpop.f32.mrf.mxu0
  %v294 = vadd.f32 0.0, %v293
  %v295 = vpop.f32.mrf.mxu0
  %v296 = vadd.f32 0.0, %v295
  %297 = vmatprep.mubr.bf16.mxu0 0
  %298 = vmatmul.mubr.bf16.gmra.mxu0 %v233
  %v299 = vpop.f32.mrf.mxu0
  %v300 = vadd.f32 0.0, %v299
  %v301 = vpop.f32.mrf.mxu0
  %v302 = vadd.f32 0.0, %v301
  %v303 = vpop.f32.mrf.mxu0
  %v304 = vadd.f32 0.0, %v303
  %v305 = vpop.f32.mrf.mxu0
  %v306 = vadd.f32 0.0, %v305
  %307 = vmatprep.mubr.bf16.mxu0 0
  %308 = vmatmul.mubr.bf16.gmra.mxu0 %v236
  %v309 = vpop.f32.mrf.mxu0
  %v310 = vadd.f32 0.0, %v309
  %v311 = vpop.f32.mrf.mxu0
  %v312 = vadd.f32 0.0, %v311
  %v313 = vpop.f32.mrf.mxu0
  %v314 = vadd.f32 0.0, %v313
  %v315 = vpop.f32.mrf.mxu0
  %v316 = vadd.f32 0.0, %v315
  %317 = vdwg.mxu0
  %v326 = vunpack.c.l.b16 %v18
  %v327 = vunpack.c.l.b16 %v19
  %v328 = vunpack.c.l.b16 %v20
  %v329 = vunpack.c.l.b16 %v21
  %v330 = vunpack.c.l.b16 %v22
  %v331 = vunpack.c.l.b16 %v23
  %v332 = vunpack.c.l.b16 %v24
  %v333 = vunpack.c.l.b16 %v25
  %v334 = vpack.c.b16 %v327, %v326
  %v335 = vpack.c.b16 %v329, %v328
  %v336 = vpack.c.b16 %v331, %v330
  %v337 = vpack.c.b16 %v333, %v332
  %v345 = vunpack.c.l.b16 %v26
  %v346 = vunpack.c.h.b16 %v26
  %v347 = vunpack.c.l.b16 %v27
  %v348 = vunpack.c.h.b16 %v27
  %v349 = vunpack.c.l.b16 %v28
  %v350 = vunpack.c.h.b16 %v28
  %v351 = vunpack.c.l.b16 %v29
  %v352 = vunpack.c.h.b16 %v29
  %v353 = vunpack.c.l.b16 %v30
  %v354 = vunpack.c.h.b16 %v30
  %v355 = vunpack.c.l.b16 %v31
  %v356 = vunpack.c.h.b16 %v31
  %v357 = vunpack.c.l.b16 %v32
  %v358 = vunpack.c.h.b16 %v32
  %v359 = vpack.c.b16 %v347, %v345
  %v360 = vpack.c.b16 %v348, %v346
  %v361 = vpack.c.b16 %v351, %v349
  %v362 = vpack.c.b16 %v352, %v350
  %v363 = vpack.c.b16 %v355, %v353
  %v364 = vpack.c.b16 %v356, %v354
  %v365 = vpack.c.b16 %v357, %v357
  %v366 = vpack.c.b16 %v358, %v358
  %v374 = vsel %vm225, %v334, 0
  %v377 = vsel %vm225, %v335, 0
  %v380 = vsel %vm225, %v336, 0
  %v383 = vsel %vm225, %v337, 0
  %v386 = vsel %vm238, %v365, 0
  %v389 = vsel %vm238, %v366, 0
  %391 = vmatprep.subr.bf16.mxu0 0
  %392 = vmatpush1.bf16.msra.mxu0 0
  %393 = vmatprep.subr.bf16.mxu0 0
  %394 = vmatpush1.bf16.msra.mxu0 0
  %395 = vmatprep.subr.bf16.mxu0 0
  %396 = vmatpush1.bf16.msra.mxu0 0
  %397 = vmatprep.subr.bf16.mxu0 0
  %398 = vmatpush1.bf16.msra.mxu0 0
  %399 = vmatprep.subr.bf16.mxu0 %v389
  %400 = vmatpush1.bf16.msra.mxu0 %v386
  %401 = vmatprep.subr.bf16.mxu0 %v364
  %402 = vmatpush1.bf16.msra.mxu0 %v363
  %403 = vmatprep.subr.bf16.mxu0 %v362
  %404 = vmatpush1.bf16.msra.mxu0 %v361
  %405 = vmatprep.subr.bf16.mxu0 %v360
  %406 = vmatpush1.bf16.msra.mxu0 %v359
  %407 = vmatprep.subr.bf16.mxu0 0
  %408 = vmatpush2.bf16.msra.mxu0 0
  %409 = vmatprep.subr.bf16.mxu0 0
  %410 = vmatpush2.bf16.msra.mxu0 0
  %411 = vmatprep.subr.bf16.mxu0 0
  %412 = vmatpush2.bf16.msra.mxu0 0
  %413 = vmatprep.subr.bf16.mxu0 0
  %414 = vmatpush2.bf16.msra.mxu0 0
  %415 = vmatprep.subr.bf16.mxu0 0
  %416 = vmatpush2.bf16.msra.mxu0 0
  %417 = vmatprep.subr.bf16.mxu0 0
  %418 = vmatpush2.bf16.msra.mxu0 0
  %419 = vmatprep.subr.bf16.mxu0 0
  %420 = vmatpush2.bf16.msra.mxu0 0
  %421 = vmatprep.subr.bf16.mxu0 0
  %422 = vmatpush2.bf16.msra.mxu0 0
  %423 = vmatprep.mubr.bf16.mxu0 0
  %424 = vmatmul.mubr.bf16.gmra.mxu0 %v374
  %v425 = vpop.f32.mrf.mxu0
  %v426 = vadd.f32 %v280, %v425
  %v427 = vpop.f32.mrf.mxu0
  %v428 = vadd.f32 %v282, %v427
  %v429 = vpop.f32.mrf.mxu0
  %v430 = vadd.f32 %v284, %v429
  %v431 = vpop.f32.mrf.mxu0
  %v432 = vadd.f32 %v286, %v431
  %433 = vmatprep.mubr.bf16.mxu0 0
  %434 = vmatmul.mubr.bf16.gmra.mxu0 %v377
  %v435 = vpop.f32.mrf.mxu0
  %v436 = vadd.f32 %v290, %v435
  %v437 = vpop.f32.mrf.mxu0
  %v438 = vadd.f32 %v292, %v437
  %v439 = vpop.f32.mrf.mxu0
  %v440 = vadd.f32 %v294, %v439
  %v441 = vpop.f32.mrf.mxu0
  %v442 = vadd.f32 %v296, %v441
  %443 = vmatprep.mubr.bf16.mxu0 0
  %444 = vmatmul.mubr.bf16.gmra.mxu0 %v380
  %v445 = vpop.f32.mrf.mxu0
  %v446 = vadd.f32 %v300, %v445
  %v447 = vpop.f32.mrf.mxu0
  %v448 = vadd.f32 %v302, %v447
  %v449 = vpop.f32.mrf.mxu0
  %v450 = vadd.f32 %v304, %v449
  %v451 = vpop.f32.mrf.mxu0
  %v452 = vadd.f32 %v306, %v451
  %453 = vmatprep.mubr.bf16.mxu0 0
  %454 = vmatmul.mubr.bf16.gmra.mxu0 %v383
  %v455 = vpop.f32.mrf.mxu0
  %v456 = vadd.f32 %v310, %v455
  %v457 = vpop.f32.mrf.mxu0
  %v458 = vadd.f32 %v312, %v457
  %v459 = vpop.f32.mrf.mxu0
  %v460 = vadd.f32 %v314, %v459
  %v461 = vpop.f32.mrf.mxu0
  %v462 = vadd.f32 %v316, %v461
  %463 = vdwg.mxu0
  %v464 = vld [vmem:[%s0] sm:$0xe]
  %v465 = vld [vmem:[%s0 + $0x8] sm:$0xe]
  %v466 = vld [vmem:[%s0 + $0x10] sm:$0xe]
  %v467 = vld [vmem:[%s0 + $0x18] sm:$0xe]
  %v468 = vld [vmem:[%s0 + $0x20] sm:$0xe]
  %v469 = vld [vmem:[%s0 + $0x28] sm:$0xe]
  %v470 = vld [vmem:[%s0 + $0x30] sm:$0xe]
  %v471 = vld [vmem:[%s0 + $0x38] sm:$0xe]
  %vm488 = vcmask 1042432
  %vm489 = vcmask 1046532
  %vm490 = vmor %vm488, %vm489
  %v491 = vrot.slane %v464, 5
  %v492 = vrot.slane %v491, 4
  %v493 = vrot.slane %v33, 5
  %v494 = vsel %vm490, %v492, %v493
  %v495 = vrot.slane %v465, 5
  %v496 = vrot.slane %v495, 4
  %v497 = vrot.slane %v34, 5
  %v498 = vsel %vm490, %v496, %v497
  %v499 = vrot.slane %v466, 5
  %v500 = vrot.slane %v499, 4
  %v501 = vrot.slane %v35, 5
  %v502 = vsel %vm490, %v500, %v501
  %v503 = vrot.slane %v467, 5
  %v504 = vrot.slane %v503, 4
  %v505 = vrot.slane %v36, 5
  %v506 = vsel %vm490, %v504, %v505
  %v507 = vrot.slane %v468, 5
  %v508 = vrot.slane %v507, 4
  %v509 = vrot.slane %v37, 5
  %v510 = vsel %vm490, %v508, %v509
  %v511 = vrot.slane %v469, 5
  %v512 = vrot.slane %v511, 4
  %v513 = vrot.slane %v38, 5
  %v514 = vsel %vm490, %v512, %v513
  %v515 = vrot.slane %v470, 5
  %v516 = vrot.slane %v515, 4
  %v517 = vrot.slane %v39, 5
  %v518 = vsel %vm490, %v516, %v517
  %v519 = vrot.slane %v471, 5
  %v520 = vrot.slane %v519, 4
  %v521 = vrot.slane %v40, 5
  %v522 = vsel %vm490, %v520, %v521
  %v523 = vld [vmem:[%s1 + $0x60] sm:$0xcc]
  %v524 = vld [vmem:[%s1 + $0x68] sm:$0xff]
  %v525 = vld [vmem:[%s1 + $0x70] sm:$0xff]
  %v526 = vld [vmem:[%s1 + $0x78] sm:$0xff]
  %v527 = vld [vmem:[%s1 + $0x80] sm:$0xff]
  %v528 = vld [vmem:[%s1 + $0x88] sm:$0xff]
  %v529 = vld [vmem:[%s1 + $0x90] sm:$0x77]
  %v530 = vunpack.c.l.b16 %v494
  %v531 = vunpack.c.l.b16 %v498
  %v532 = vunpack.c.l.b16 %v502
  %v533 = vunpack.c.l.b16 %v506
  %v534 = vunpack.c.l.b16 %v510
  %v535 = vunpack.c.l.b16 %v514
  %v536 = vunpack.c.l.b16 %v518
  %v537 = vunpack.c.l.b16 %v522
  %v538 = vpack.c.b16 %v531, %v530
  %v539 = vpack.c.b16 %v533, %v532
  %v540 = vpack.c.b16 %v535, %v534
  %v541 = vpack.c.b16 %v537, %v536
  %v549 = vunpack.c.l.b16 %v523
  %v550 = vunpack.c.h.b16 %v523
  %v551 = vunpack.c.l.b16 %v524
  %v552 = vunpack.c.h.b16 %v524
  %v553 = vunpack.c.l.b16 %v525
  %v554 = vunpack.c.h.b16 %v525
  %v555 = vunpack.c.l.b16 %v526
  %v556 = vunpack.c.h.b16 %v526
  %v557 = vunpack.c.l.b16 %v527
  %v558 = vunpack.c.h.b16 %v527
  %v559 = vunpack.c.l.b16 %v528
  %v560 = vunpack.c.h.b16 %v528
  %v561 = vunpack.c.l.b16 %v529
  %v562 = vunpack.c.h.b16 %v529
  %v563 = vpack.c.b16 %v551, %v549
  %v564 = vpack.c.b16 %v552, %v550
  %v565 = vpack.c.b16 %v555, %v553
  %v566 = vpack.c.b16 %v556, %v554
  %v567 = vpack.c.b16 %v559, %v557
  %v568 = vpack.c.b16 %v560, %v558
  %v569 = vpack.c.b16 %v561, %v561
  %v570 = vpack.c.b16 %v562, %v562
  %vm571 = vcmask 1045504
  %v572 = vrot.slane %v563, 2
  %v573 = vrot.slane %v565, 2
  %v574 = vsel %vm571, %v572, %v573
  %v575 = vrot.slane %v564, 2
  %v576 = vrot.slane %v566, 2
  %v577 = vsel %vm571, %v575, %v576
  %v578 = vrot.slane %v567, 2
  %v579 = vsel %vm571, %v573, %v578
  %v580 = vrot.slane %v568, 2
  %v581 = vsel %vm571, %v576, %v580
  %v582 = vrot.slane %v569, 2
  %v583 = vsel %vm571, %v578, %v582
  %v584 = vrot.slane %v570, 2
  %v585 = vsel %vm571, %v580, %v584
  %v593 = vsel %vm225, %v538, 0
  %v596 = vsel %vm225, %v539, 0
  %v599 = vsel %vm225, %v540, 0
  %v602 = vsel %vm225, %v541, 0
  %v605 = vsel %vm238, %v582, 0
  %v608 = vsel %vm238, %v584, 0
  %610 = vmatprep.subr.bf16.mxu0 0
  %611 = vmatpush1.bf16.msra.mxu0 0
  %612 = vmatprep.subr.bf16.mxu0 0
  %613 = vmatpush1.bf16.msra.mxu0 0
  %614 = vmatprep.subr.bf16.mxu0 0
  %615 = vmatpush1.bf16.msra.mxu0 0
  %616 = vmatprep.subr.bf16.mxu0 0
  %617 = vmatpush1.bf16.msra.mxu0 0
  %618 = vmatprep.subr.bf16.mxu0 %v608
  %619 = vmatpush1.bf16.msra.mxu0 %v605
  %620 = vmatprep.subr.bf16.mxu0 %v585
  %621 = vmatpush1.bf16.msra.mxu0 %v583
  %622 = vmatprep.subr.bf16.mxu0 %v581
  %623 = vmatpush1.bf16.msra.mxu0 %v579
  %624 = vmatprep.subr.bf16.mxu0 %v577
  %625 = vmatpush1.bf16.msra.mxu0 %v574
  %626 = vmatprep.subr.bf16.mxu0 0
  %627 = vmatpush2.bf16.msra.mxu0 0
  %628 = vmatprep.subr.bf16.mxu0 0
  %629 = vmatpush2.bf16.msra.mxu0 0
  %630 = vmatprep.subr.bf16.mxu0 0
  %631 = vmatpush2.bf16.msra.mxu0 0
  %632 = vmatprep.subr.bf16.mxu0 0
  %633 = vmatpush2.bf16.msra.mxu0 0
  %634 = vmatprep.subr.bf16.mxu0 0
  %635 = vmatpush2.bf16.msra.mxu0 0
  %636 = vmatprep.subr.bf16.mxu0 0
  %637 = vmatpush2.bf16.msra.mxu0 0
  %638 = vmatprep.subr.bf16.mxu0 0
  %639 = vmatpush2.bf16.msra.mxu0 0
  %640 = vmatprep.subr.bf16.mxu0 0
  %641 = vmatpush2.bf16.msra.mxu0 0
  %642 = vmatprep.mubr.bf16.mxu0 0
  %643 = vmatmul.mubr.bf16.gmra.mxu0 %v593
  %v644 = vpop.f32.mrf.mxu0
  %v645 = vadd.f32 0.0, %v644
  %v646 = vpop.f32.mrf.mxu0
  %v647 = vadd.f32 0.0, %v646
  %v648 = vpop.f32.mrf.mxu0
  %v649 = vadd.f32 0.0, %v648
  %v650 = vpop.f32.mrf.mxu0
  %v651 = vadd.f32 0.0, %v650
  %652 = vmatprep.mubr.bf16.mxu0 0
  %653 = vmatmul.mubr.bf16.gmra.mxu0 %v596
  %v654 = vpop.f32.mrf.mxu0
  %v655 = vadd.f32 0.0, %v654
  %v656 = vpop.f32.mrf.mxu0
  %v657 = vadd.f32 0.0, %v656
  %v658 = vpop.f32.mrf.mxu0
  %v659 = vadd.f32 0.0, %v658
  %v660 = vpop.f32.mrf.mxu0
  %v661 = vadd.f32 0.0, %v660
  %662 = vmatprep.mubr.bf16.mxu0 0
  %663 = vmatmul.mubr.bf16.gmra.mxu0 %v599
  %v664 = vpop.f32.mrf.mxu0
  %v665 = vadd.f32 0.0, %v664
  %v666 = vpop.f32.mrf.mxu0
  %v667 = vadd.f32 0.0, %v666
  %v668 = vpop.f32.mrf.mxu0
  %v669 = vadd.f32 0.0, %v668
  %v670 = vpop.f32.mrf.mxu0
  %v671 = vadd.f32 0.0, %v670
  %672 = vmatprep.mubr.bf16.mxu0 0
  %673 = vmatmul.mubr.bf16.gmra.mxu0 %v602
  %v674 = vpop.f32.mrf.mxu0
  %v675 = vadd.f32 0.0, %v674
  %v676 = vpop.f32.mrf.mxu0
  %v677 = vadd.f32 0.0, %v676
  %v678 = vpop.f32.mrf.mxu0
  %v679 = vadd.f32 0.0, %v678
  %v680 = vpop.f32.mrf.mxu0
  %v681 = vadd.f32 0.0, %v680
  %682 = vdwg.mxu0
  %v683 = vadd.f32 %v426, %v645
  %v684 = vadd.f32 %v428, %v647
  %v685 = vadd.f32 %v430, %v649
  %v686 = vadd.f32 %v432, %v651
  %v687 = vadd.f32 %v436, %v655
  %v688 = vadd.f32 %v438, %v657
  %v689 = vadd.f32 %v440, %v659
  %v690 = vadd.f32 %v442, %v661
  %v691 = vadd.f32 %v446, %v665
  %v692 = vadd.f32 %v448, %v667
  %v693 = vadd.f32 %v450, %v669
  %v694 = vadd.f32 %v452, %v671
  %v695 = vadd.f32 %v456, %v675
  %v696 = vadd.f32 %v458, %v677
  %v697 = vadd.f32 %v460, %v679
  %v698 = vadd.f32 %v462, %v681
  %v699 = vld [vmem:[%s2] sm:$0x3]
  %v701 = vlaneseq
  %v702 = vshrl.u32 %v701, 7
  %v703 = vsub.s32 0, %v702
  %v704 = vrot.slane %v699, %v703
  %v705 = vlaneseq
  %v706 = vshrl.u32 %v705, 7
  %v707 = vsub.s32 1, %v706
  %v708 = vrot.slane %v699, %v707
  %v711 = vadd.f32 %v683, %v704
  %v712 = vadd.f32 %v684, %v708
  %v713 = vadd.f32 %v685, %v704
  %v714 = vadd.f32 %v686, %v708
  %v715 = vadd.f32 %v687, %v704
  %v716 = vadd.f32 %v688, %v708
  %v717 = vadd.f32 %v689, %v704
  %v718 = vadd.f32 %v690, %v708
  %v719 = vadd.f32 %v691, %v704
  %v720 = vadd.f32 %v692, %v708
  %v721 = vadd.f32 %v693, %v704
  %v722 = vadd.f32 %v694, %v708
  %v723 = vadd.f32 %v695, %v704
  %v724 = vadd.f32 %v696, %v708
  %v725 = vadd.f32 %v697, %v704
  %v726 = vadd.f32 %v698, %v708
  %v727 = vtanh.pop %v711
  %v728 = vtanh.pop %v712
  %v729 = vtanh.pop %v713
  %v730 = vtanh.pop %v714
  %v731 = vtanh.pop %v715
  %v732 = vtanh.pop %v716
  %v733 = vtanh.pop %v717
  %v734 = vtanh.pop %v718
  %v735 = vtanh.pop %v719
  %v736 = vtanh.pop %v720
  %v737 = vtanh.pop %v721
  %v738 = vtanh.pop %v722
  %v739 = vtanh.pop %v723
  %v740 = vtanh.pop %v724
  %v741 = vtanh.pop %v725
  %v742 = vtanh.pop %v726
  %v743 = vld [vmem:[%s3] sm:$0xff]
  %v744 = vld [vmem:[%s3 + $0x8] sm:$0xff]
  %v745 = vadd.f32 %v727, %v743
  %v746 = vadd.f32 %v728, %v744
  %v747 = vadd.f32 %v729, %v743
  %v748 = vadd.f32 %v730, %v744
  %v749 = vadd.f32 %v731, %v743
  %v750 = vadd.f32 %v732, %v744
  %v751 = vadd.f32 %v733, %v743
  %v752 = vadd.f32 %v734, %v744
  %v753 = vadd.f32 %v735, %v743
  %v754 = vadd.f32 %v736, %v744
  %v755 = vadd.f32 %v737, %v743
  %v756 = vadd.f32 %v738, %v744
  %v757 = vadd.f32 %v739, %v743
  %v758 = vadd.f32 %v740, %v744
  %v759 = vadd.f32 %v741, %v743
  %v760 = vadd.f32 %v742, %v744
  %v761 = vrot.slane %v745, 4
  %v762 = vmax.f32 %v745, %v761
  %v763 = vrot.slane %v762, 2
  %v764 = vmax.f32 %v762, %v763
  %v765 = vrot.slane %v764, 1
  %v766 = vmax.f32 %v764, %v765
  %v767 = vrot.slane %v746, 4
  %v768 = vmax.f32 %v746, %v767
  %v769 = vrot.slane %v768, 2
  %v770 = vmax.f32 %v768, %v769
  %v771 = vrot.slane %v770, 1
  %v772 = vmax.f32 %v770, %v771
  %v773 = vrot.slane %v747, 4
  %v774 = vmax.f32 %v747, %v773
  %v775 = vrot.slane %v774, 2
  %v776 = vmax.f32 %v774, %v775
  %v777 = vrot.slane %v776, 1
  %v778 = vmax.f32 %v776, %v777
  %v779 = vrot.slane %v748, 4
  %v780 = vmax.f32 %v748, %v779
  %v781 = vrot.slane %v780, 2
  %v782 = vmax.f32 %v780, %v781
  %v783 = vrot.slane %v782, 1
  %v784 = vmax.f32 %v782, %v783
  %v785 = vrot.slane %v749, 4
  %v786 = vmax.f32 %v749, %v785
  %v787 = vrot.slane %v786, 2
  %v788 = vmax.f32 %v786, %v787
  %v789 = vrot.slane %v788, 1
  %v790 = vmax.f32 %v788, %v789
  %v791 = vrot.slane %v750, 4
  %v792 = vmax.f32 %v750, %v791
  %v793 = vrot.slane %v792, 2
  %v794 = vmax.f32 %v792, %v793
  %v795 = vrot.slane %v794, 1
  %v796 = vmax.f32 %v794, %v795
  %v797 = vrot.slane %v751, 4
  %v798 = vmax.f32 %v751, %v797
  %v799 = vrot.slane %v798, 2
  %v800 = vmax.f32 %v798, %v799
  %v801 = vrot.slane %v800, 1
  %v802 = vmax.f32 %v800, %v801
  %v803 = vrot.slane %v752, 4
  %v804 = vmax.f32 %v752, %v803
  %v805 = vrot.slane %v804, 2
  %v806 = vmax.f32 %v804, %v805
  %v807 = vrot.slane %v806, 1
  %v808 = vmax.f32 %v806, %v807
  %v809 = vrot.slane %v753, 4
  %v810 = vmax.f32 %v753, %v809
  %v811 = vrot.slane %v810, 2
  %v812 = vmax.f32 %v810, %v811
  %v813 = vrot.slane %v812, 1
  %v814 = vmax.f32 %v812, %v813
  %v815 = vrot.slane %v754, 4
  %v816 = vmax.f32 %v754, %v815
  %v817 = vrot.slane %v816, 2
  %v818 = vmax.f32 %v816, %v817
  %v819 = vrot.slane %v818, 1
  %v820 = vmax.f32 %v818, %v819
  %v821 = vrot.slane %v755, 4
  %v822 = vmax.f32 %v755, %v821
  %v823 = vrot.slane %v822, 2
  %v824 = vmax.f32 %v822, %v823
  %v825 = vrot.slane %v824, 1
  %v826 = vmax.f32 %v824, %v825
  %v827 = vrot.slane %v756, 4
  %v828 = vmax.f32 %v756, %v827
  %v829 = vrot.slane %v828, 2
  %v830 = vmax.f32 %v828, %v829
  %v831 = vrot.slane %v830, 1
  %v832 = vmax.f32 %v830, %v831
  %v833 = vrot.slane %v757, 4
  %v834 = vmax.f32 %v757, %v833
  %v835 = vrot.slane %v834, 2
  %v836 = vmax.f32 %v834, %v835
  %v837 = vrot.slane %v836, 1
  %v838 = vmax.f32 %v836, %v837
  %v839 = vrot.slane %v758, 4
  %v840 = vmax.f32 %v758, %v839
  %v841 = vrot.slane %v840, 2
  %v842 = vmax.f32 %v840, %v841
  %v843 = vrot.slane %v842, 1
  %v844 = vmax.f32 %v842, %v843
  %v845 = vrot.slane %v759, 4
  %v846 = vmax.f32 %v759, %v845
  %v847 = vrot.slane %v846, 2
  %v848 = vmax.f32 %v846, %v847
  %v849 = vrot.slane %v848, 1
  %v850 = vmax.f32 %v848, %v849
  %v851 = vrot.slane %v760, 4
  %v852 = vmax.f32 %v760, %v851
  %v853 = vrot.slane %v852, 2
  %v854 = vmax.f32 %v852, %v853
  %v855 = vrot.slane %v854, 1
  %v856 = vmax.f32 %v854, %v855
  %vm873 = vcmask 1041409
  %v874 = vsel %vm873, %v778, %v766
  %vm875 = vcmask 1042434
  %v876 = vsel %vm875, %v790, %v874
  %vm877 = vcmask 1043459
  %v878 = vsel %vm877, %v802, %v876
  %vm879 = vcmask 1044484
  %v880 = vsel %vm879, %v814, %v878
  %vm881 = vcmask 1045509
  %v882 = vsel %vm881, %v826, %v880
  %vm883 = vcmask 1046534
  %v884 = vsel %vm883, %v838, %v882
  %vm885 = vcmask 1047559
  %v886 = vsel %vm885, %v850, %v884
  %v887 = vsel %vm873, %v784, %v772
  %v888 = vsel %vm875, %v796, %v887
  %v889 = vsel %vm877, %v808, %v888
  %v890 = vsel %vm879, %v820, %v889
  %v891 = vsel %vm881, %v832, %v890
  %v892 = vsel %vm883, %v844, %v891
  %v893 = vsel %vm885, %v856, %v892
  %896 = vst [vmem:[%s4] sm:$0xff] %v886
  %897 = vst [vmem:[%s4 + $0x8] sm:$0xff] %v893
  // Predicated region
  $region18: #{conv_module_forward.1} parent=0 // pred_check
    _
  $region19: #{conv_module_forward.1} parent=0 // pred_check_branch
    %899 = sbr.rel (0) target = $region21
  $region20: #{conv_module_forward.1} parent=0 // pred_region
    _
  $region21: #{conv_module_forward.1} parent=0 // pred_fallthru
    _
  // Predicated region
  $region22: #{conv_module_forward.1} parent=0 // pred_check
    _
  $region23: #{conv_module_forward.1} parent=0 // pred_check_branch
    %901 = sbr.rel (0) target = $region25
  $region24: #{conv_module_forward.1} parent=0 // pred_region
    _
  $region25: #{conv_module_forward.1} parent=0 // pred_fallthru
    _

</llo_original>
